<compile_context>
chip_gen: v6e
topology: v6e:2x2x1
jax: 0.10.0
libtpu: 0.0.40
codegen_flags: <defaults>
</compile_context>

<pallas_src>
import functools

import jax
import jax.numpy as jnp
from jax import lax
from jax.experimental import pallas as pl
from jax.experimental.pallas import tpu as pltpu

LANES = 128
SUBLANES = 8
ROWS_PER_CHUNK = 256          # rows per fori_loop step inside one tile


def _device_defaults():
    """Generation-aware tile height and scoped-VMEM budget."""
    try:
        kind = jax.devices()[0].device_kind.lower()
    except Exception:  # no devices visible (e.g. AOT compile host)
        kind = ""
    if "v7" in kind:
        # 64 MiB physical VMEM: 8192-row tiles (24 MiB pipelined, weighted f32
        # path) + headroom for Mosaic internal scratch.
        return 8192, 40 * 1024 * 1024
    # v5e / v6e / v5p: 128 MiB physical VMEM.
    return 8192, 64 * 1024 * 1024


TM_MAX, VMEM_LIMIT_BYTES = _device_defaults()


def _tile_partial_sum(x_ref, t_ref, w_ref, o_ref, *, tm, rows_chunk, m_valid):
    """One grid step: reduce a (tm, 128) tile to an (8, 128) f32 partial sum."""
    i = pl.program_id(0)
    nchunks = tm // rows_chunk
    unroll = 2 if nchunks % 2 == 0 else 1

    def reduce_tile(masked):
        def body(c, acc):
            r0 = pl.multiple_of(c * rows_chunk, rows_chunk)
            x = x_ref[pl.ds(r0, rows_chunk), :].astype(jnp.float32)
            t = t_ref[pl.ds(r0, rows_chunk), :].astype(jnp.float32)
            d = x - t
            sq = d * d
            if w_ref is not None:
                sq = sq * w_ref[pl.ds(r0, rows_chunk), :].astype(jnp.float32)
            if masked:
                rows = (lax.broadcasted_iota(jnp.int32, sq.shape, 0)
                        + (i * tm + r0))
                sq = jnp.where(rows < m_valid, sq, 0.0)
            # Sublane-group reduction: pure VPU vreg adds, no cross-lane XLU.
            return acc + jnp.sum(
                sq.reshape(rows_chunk // SUBLANES, SUBLANES, LANES), axis=0)

        return lax.fori_loop(0, nchunks, body,
                             jnp.zeros((SUBLANES, LANES), jnp.float32),
                             unroll=unroll)

    if m_valid % tm == 0:
        # Every grid block is full: no masking anywhere.
        o_ref[...] = reduce_tile(False)
    else:
        nb = pl.num_programs(0)

        @pl.when(i < nb - 1)
        def _():
            o_ref[...] = reduce_tile(False)

        @pl.when(i == nb - 1)
        def _():
            o_ref[...] = reduce_tile(True)


def _wmse_kernel(x_ref, t_ref, o_ref, *, tm, rows_chunk, m_valid):
    _tile_partial_sum(x_ref, t_ref, None, o_ref,
                      tm=tm, rows_chunk=rows_chunk, m_valid=m_valid)


def _wmse_kernel_weighted(x_ref, t_ref, w_ref, o_ref, *, tm, rows_chunk, m_valid):
    _tile_partial_sum(x_ref, t_ref, w_ref, o_ref,
                      tm=tm, rows_chunk=rows_chunk, m_valid=m_valid)


def _pallas_partial_sums(x2, t2, w2, *, m, tm):
    """Sum of weighted squared errors over a (m, 128) f32/bf16 view."""
    nb = pl.cdiv(m, tm)
    rows_chunk = ROWS_PER_CHUNK
    while tm % rows_chunk != 0:   # tm is a multiple of 8 -> terminates at >= 8
        rows_chunk //= 2

    tile_spec = pl.BlockSpec((tm, LANES), lambda i: (i, 0))
    out_spec = pl.BlockSpec((None, SUBLANES, LANES), lambda i: (i, 0, 0))
    out_shape = jax.ShapeDtypeStruct((nb, SUBLANES, LANES), jnp.float32)
    params = pltpu.CompilerParams(
        dimension_semantics=("parallel",),
        vmem_limit_bytes=VMEM_LIMIT_BYTES,
    )

    if w2 is None:
        kernel = functools.partial(_wmse_kernel, tm=tm,
                                   rows_chunk=rows_chunk, m_valid=m)
        in_specs = [tile_spec, tile_spec]
        operands = (x2, t2)
    else:
        kernel = functools.partial(_wmse_kernel_weighted, tm=tm,
                                   rows_chunk=rows_chunk, m_valid=m)
        in_specs = [tile_spec, tile_spec, tile_spec]
        operands = (x2, t2, w2)

    partials = pl.pallas_call(
        kernel,
        out_shape=out_shape,
        grid=(nb,),
        in_specs=in_specs,
        out_specs=out_spec,
        compiler_params=params,
    )(*operands)
    return jnp.sum(partials)


def _fused_xla_mean(inputs, targets, weight):
    """Plain-XLA fallback (fused broadcast + square + reduce, 2 HBM streams)."""
    d = inputs.astype(jnp.float32) - targets.astype(jnp.float32)
    sq = d * d
    if weight is not None:
        sq = sq * jnp.asarray(weight).astype(jnp.float32)
    return jnp.mean(sq)


@jax.jit
def weighted_mse_loss(inputs, targets, weight=None):
    n = inputs.size
    inv_n = 1.0 / float(n)       # computed in Python float64, rounded once below

    w_scale = None               # scalar weight: folded in after the reduction
    w_full = None                # full-shape weight: streamed as third input
    if weight is not None:
        w_arr = jnp.asarray(weight)
        if w_arr.size == 1:
            w_scale = w_arr.reshape(()).astype(jnp.float32)
        elif w_arr.shape == inputs.shape:
            w_full = w_arr
        else:
            # TODO(synk): partial-broadcast (non-scalar, non-full-shape) weights
            # use a fused XLA reduction instead of materializing the broadcast
            # to HBM and streaming it as a third kernel input.
            return _fused_xla_mean(inputs, targets, weight)

    if inputs.shape != targets.shape:
        # Rare broadcasting between inputs and targets: keep exact semantics.
        return _fused_xla_mean(inputs, targets, weight)

    x = inputs.reshape(-1)
    t = targets.reshape(-1)
    w_flat = None if w_full is None else w_full.reshape(-1)

    # Multiple-of-(8*128) prefix runs through the kernel (zero-copy reshape in
    # the common case); the small tail is added with plain jnp -- no jnp.pad.
    chunk = SUBLANES * LANES
    n_main = (n // chunk) * chunk

    total = jnp.float32(0.0)

    if n_main > 0:
        m = n_main // LANES                 # rows of the 2-D view, multiple of 8
        tm = min(TM_MAX, m)                 # rows per grid step, multiple of 8
        x2 = x[:n_main].reshape(m, LANES)
        t2 = t[:n_main].reshape(m, LANES)
        w2 = None if w_flat is None else w_flat[:n_main].reshape(m, LANES)
        total = total + _pallas_partial_sums(x2, t2, w2, m=m, tm=tm)

    if n_main != n:
        d_tail = (x[n_main:].astype(jnp.float32)
                  - t[n_main:].astype(jnp.float32))
        sq_tail = d_tail * d_tail
        if w_flat is not None:
            sq_tail = sq_tail * w_flat[n_main:].astype(jnp.float32)
        total = total + jnp.sum(sq_tail)

    loss = total * jnp.float32(inv_n)
    if w_scale is not None:
        loss = loss * w_scale
    return loss


if __name__ == "__main__":
    key = jax.random.PRNGKey(0)
    k1, k2, k3, k4, k5 = jax.random.split(key, 5)

    shape = (2, 4, 16, 16)  # NCHW; 2048 elements -> zero-copy kernel path
    inputs = jax.random.normal(k1, shape, jnp.float32)
    targets = jax.random.normal(k2, shape, jnp.float32)
    weight = jax.random.uniform(k3, shape, jnp.float32)

    loss_default = weighted_mse_loss(inputs, targets)               # weight = 1.0
    loss_scalar = weighted_mse_loss(inputs, targets, weight=0.5)    # scalar weight
    loss_dense = weighted_mse_loss(inputs, targets, weight=weight)  # full-shape weight

    # Ragged size exercises the prefix + tail split (1050 = 1024 kernel + 26 tail).
    shape_r = (3, 7, 50)
    xr = jax.random.normal(k4, shape_r, jnp.float32)
    tr = jax.random.normal(k5, shape_r, jnp.float32)
    loss_ragged = weighted_mse_loss(xr, tr)

    jax.block_until_ready((loss_default, loss_scalar, loss_dense, loss_ragged))

    # Reference checks in plain JAX.
    ref_default = jnp.mean(jnp.square(inputs - targets))
    ref_scalar = jnp.mean(0.5 * jnp.square(inputs - targets))
    ref_dense = jnp.mean(weight * jnp.square(inputs - targets))
    ref_ragged = jnp.mean(jnp.square(xr - tr))
    assert jnp.allclose(loss_default, ref_default, rtol=1e-5, atol=1e-6)
    assert jnp.allclose(loss_scalar, ref_scalar, rtol=1e-5, atol=1e-6)
    assert jnp.allclose(loss_dense, ref_dense, rtol=1e-5, atol=1e-6)
    assert jnp.allclose(loss_ragged, ref_ragged, rtol=1e-5, atol=1e-6)

    print("KERNEL_OK")
</pallas_src>

<mosaic_0001>
module attributes {stable_mosaic.version = 11 : i64} {
  func.func @_wmse_kernel(%arg0: i32, %arg1: memref<16x128xf32, #tpu.memory_space<vmem>>, %arg2: memref<16x128xf32, #tpu.memory_space<vmem>>, %arg3: memref<1x8x128xf32, #tpu.memory_space<vmem>>) attributes {dimension_semantics = [#tpu.dimension_semantics<parallel>], iteration_bounds = array<i64: 1>, scalar_prefetch = 0 : i64, scratch_operands = 0 : i64, tpu.core_type = #tpu.core_type<tc>, window_params = [{transform_indices = @transform_0, window_bounds = array<i64: 16, 128>}, {transform_indices = @transform_1, window_bounds = array<i64: 16, 128>}, {transform_indices = @transform_2, window_bounds = array<i64: 1, 8, 128>}]} {
    %cst = arith.constant 0.000000e+00 : f32
    %0 = vector.broadcast %cst : f32 to vector<8x128xf32>
    %c0_i32 = arith.constant 0 : i32
    %c16_i32 = arith.constant 16 : i32
    %1 = arith.muli %c0_i32, %c16_i32 : i32
    %2 = tpu.assume_multiple %1, 16 : i32
    %3 = arith.index_cast %2 : i32 to index
    %c0 = arith.constant 0 : index
    %4 = vector.load %arg1[%3, %c0] : memref<16x128xf32, #tpu.memory_space<vmem>>, vector<16x128xf32>
    %5 = arith.index_cast %2 : i32 to index
    %c0_0 = arith.constant 0 : index
    %6 = vector.load %arg2[%5, %c0_0] : memref<16x128xf32, #tpu.memory_space<vmem>>, vector<16x128xf32>
    %7 = arith.subf %4, %6 : vector<16x128xf32>
    %8 = arith.mulf %7, %7 : vector<16x128xf32>
    %9 = vector.shape_cast %8 : vector<16x128xf32> to vector<2x8x128xf32>
    %cst_1 = arith.constant dense<0.000000e+00> : vector<8x128xf32>
    %10 = vector.multi_reduction <add>, %9, %cst_1 [0] : vector<2x8x128xf32> to vector<8x128xf32>
    %11 = arith.addf %0, %10 : vector<8x128xf32>
    %c1_i32 = arith.constant 1 : i32
    %c0_2 = arith.constant 0 : index
    %c0_3 = arith.constant 0 : index
    %c0_4 = arith.constant 0 : index
    %12 = vector.load %arg3[%c0_2, %c0_3, %c0_4] : memref<1x8x128xf32, #tpu.memory_space<vmem>>, vector<1x8x128xf32>
    %13 = vector.shape_cast %12 : vector<1x8x128xf32> to vector<8x128xf32>
    %14 = vector.shape_cast %11 : vector<8x128xf32> to vector<1x8x128xf32>
    tpu.vector_store %arg3[%c0_2, %c0_3, %c0_4], %14 {strides = array<i32>} : memref<1x8x128xf32, #tpu.memory_space<vmem>>, vector<1x8x128xf32>,
    return
  }
  func.func @transform_0(%arg0: i32) -> (i32, i32) {
    %c0_i32 = arith.constant 0 : i32
    %c0_i32_0 = arith.constant 0 : i32
    return %arg0, %c0_i32 : i32, i32
  }
  func.func @transform_1(%arg0: i32) -> (i32, i32) {
    %c0_i32 = arith.constant 0 : i32
    %c0_i32_0 = arith.constant 0 : i32
    return %arg0, %c0_i32 : i32, i32
  }
  func.func @transform_2(%arg0: i32) -> (i32, i32, i32) {
    %c0_i32 = arith.constant 0 : i32
    %c0_i32_0 = arith.constant 0 : i32
    %c0_i32_1 = arith.constant 0 : i32
    return %arg0, %c0_i32, %c0_i32_0 : i32, i32, i32
  }
}

</mosaic_0001>

<llo_original>
// kernel: weighted_mse_loss.1
$region0: #{weighted_mse_loss.1}
  #allocation0 [shape = 'u32[]', space=smem, size = 0x4, offset = 0x4, fixed_abs, tag = 'smem constant byte address 0x4 - core index']
  #allocation1 [shape = 'u32[144,128]{1,0:T(1,128)}', space=vmem, size = 0x12000, scoped, tag = 'internal scratch']
  %s0 = inlined_call_operand.vmem [shape: f32[16,128], index: 0, kind: input, shape index: {}]
  %s1 = inlined_call_operand.vmem [shape: f32[16,128], index: 1, kind: input, shape index: {}]
  %s2 = inlined_call_operand.vmem [shape: f32[1,8,128], index: 2, kind: output, shape index: {}]
  %s3 = sld [smem:[#allocation0]]
  $region18: #{weighted_mse_loss.1} parent=0
    _
  %s5 = ssub.s32 1, %s3
  %s6 = scalar_select 0, %s5, %s3
  // Predicated region
  $region2: #{weighted_mse_loss.1} parent=0 // pred_check
    _
  $region3: #{weighted_mse_loss.1} parent=0 // pred_check_branch
    %8 = sbr.rel (0) target = $region5
  $region4: #{weighted_mse_loss.1} parent=0 // pred_region
    _
  $region5: #{weighted_mse_loss.1} parent=0 // pred_fallthru
    _
  // Predicated region
  $region6: #{weighted_mse_loss.1} parent=0 // pred_check
    _
  $region7: #{weighted_mse_loss.1} parent=0 // pred_check_branch
    %10 = sbr.rel (0) target = $region9
  $region8: #{weighted_mse_loss.1} parent=0 // pred_region
    _
  $region9: #{weighted_mse_loss.1} parent=0 // pred_fallthru
    _
  %v11 = vld [vmem:[%s0] sm:$0xff]
  %v12 = vld [vmem:[%s0 + $0x8] sm:$0xff]
  %v13 = vld [vmem:[%s1] sm:$0xff]
  %v14 = vld [vmem:[%s1 + $0x8] sm:$0xff]
  %v15 = vsub.f32 %v11, %v13
  %v16 = vsub.f32 %v12, %v14
  %v17 = vmul.f32 %v15, %v15
  %v18 = vmul.f32 %v16, %v16
  %v19 = vadd.f32 %v17, %v18
  %v20 = vadd.f32 %v19, 0.0
  %21 = vst [vmem:[%s2] sm:$0xff] %v20
  // Predicated region
  $region10: #{weighted_mse_loss.1} parent=0 // pred_check
    _
  $region11: #{weighted_mse_loss.1} parent=0 // pred_check_branch
    %23 = sbr.rel (0) target = $region13
  $region12: #{weighted_mse_loss.1} parent=0 // pred_region
    _
  $region13: #{weighted_mse_loss.1} parent=0 // pred_fallthru
    _
  // Predicated region
  $region14: #{weighted_mse_loss.1} parent=0 // pred_check
    _
  $region15: #{weighted_mse_loss.1} parent=0 // pred_check_branch
    %25 = sbr.rel (0) target = $region17
  $region16: #{weighted_mse_loss.1} parent=0 // pred_region
    _
  $region17: #{weighted_mse_loss.1} parent=0 // pred_fallthru
    _

</llo_original>
